<compile_context>
chip_gen: v7x
topology: tpu7x:2x2x1
jax: 0.10.0
libtpu: 0.0.40
codegen_flags: <defaults>
</compile_context>

<pallas_src>
import functools

import jax
import jax.numpy as jnp
import numpy as np
from jax.experimental import pallas as pl
from jax.experimental.pallas import tpu as pltpu

_LANE = 128        # vreg lane width  (last-dim tile quantum)
_SUB = 8           # vreg sublane width (2nd-last-dim tile quantum)
_MAX_CHUNKS = 512  # cap on 128-lane chunks per pass-1 block (bounds loop len)


# --------------------------------------------------------------- kernels ---


def _stats_kernel(x_ref, w_ref, b_ref, scale_ref, shift_ref,
                  sum_acc, sq_acc, *, eps, inv_m, n_blk, lane_chunks):
    """Pass 1: accumulate per-channel sum / sum^2; finalize scale & shift.

    NOTE: correctness relies on the grid order (C_tiles, N_tiles, HW_tiles):
    the channel axis (the only axis the scale/shift output blocks depend on)
    is OUTERMOST, so for each channel tile all (n, h) reduction steps run
    consecutively and the finalize `pl.when` fires exactly once per tile.
    Do not reorder the grid axes.
    """
    n = pl.program_id(1)
    h = pl.program_id(2)

    @pl.when((n == 0) & (h == 0))
    def _init():
        sum_acc[...] = jnp.zeros_like(sum_acc)
        sq_acc[...] = jnp.zeros_like(sq_acc)

    def accum_chunk(i, off):
        xk = x_ref[i, :, pl.ds(off, _LANE)].astype(jnp.float32)  # (c_tile,128)
        sum_acc[...] += xk
        sq_acc[...] += xk * xk

    if lane_chunks:
        # Lane-dense spatial tile: VPU-only accumulation into a (c_tile, 128)
        # lane-partial; the 128->1 XLU reduce and rsqrt are deferred to the
        # finalize so the per-step critical path is just loads + adds.
        total = n_blk * lane_chunks
        if total <= 32:
            for i in range(n_blk):
                for k in range(lane_chunks):
                    accum_chunk(i, k * _LANE)
        else:
            def body(t, carry):
                i = t // lane_chunks
                k = t - i * lane_chunks
                accum_chunk(i, pl.multiple_of(k * _LANE, _LANE))
                return carry
            jax.lax.fori_loop(0, total, body, 0, unroll=4)
    else:
        # Ragged spatial extent (HW % 128 != 0): per-image cross-lane reduce.
        for i in range(n_blk):
            xi = x_ref[i].astype(jnp.float32)                    # (c_tile, HW)
            sum_acc[...] += jnp.sum(xi, axis=1, keepdims=True)
            sq_acc[...] += jnp.sum(xi * xi, axis=1, keepdims=True)

    @pl.when((n == pl.num_programs(1) - 1) & (h == pl.num_programs(2) - 1))
    def _finalize():
        total_sum = jnp.sum(sum_acc[...], axis=1, keepdims=True)  # (c_tile, 1)
        total_sq = jnp.sum(sq_acc[...], axis=1, keepdims=True)
        mean = total_sum * inv_m
        # Biased batch variance via E[x^2] - mean^2 (f32 accumulation); clamp
        # guards cancellation.
        # TODO(synk): switch to a per-tile-mean / Welford-style combine if
        # accuracy at very large N*H*W or large activation magnitudes matters.
        var = jnp.maximum(total_sq * inv_m - mean * mean, 0.0)
        inv_std = jax.lax.rsqrt(var + eps)
        sc = w_ref[...] * inv_std                 # w / std
        scale_ref[...] = sc
        shift_ref[...] = b_ref[...] - mean * sc   # b - w*mean/std


def _apply_kernel(x_ref, scale_ref, shift_ref, o_ref):
    """Pass 2: out = x * scale_c + shift_c (single fused multiply-add)."""
    x = x_ref[...].astype(jnp.float32)            # (n_blk, c_tile, hw_tile)
    o_ref[...] = (x * scale_ref[...] + shift_ref[...]).astype(o_ref.dtype)


# ---------------------------------------------------------- tile selection ---


def _vmem_capacity_bytes():
    try:
        cap = int(pltpu.get_tpu_info().vmem_capacity_bytes)
        if cap > 0:
            return cap
    except Exception:
        pass
    return 64 * 1024 * 1024   # conservative default (v7x per-TensorCore VMEM)


def _pick_c_tile(C):
    # Channel tile: multiple of 8 (sublane) or the full C dim.  Capped at 64
    # and, when possible, chosen so C // c_tile >= 2: keeps register pressure
    # bounded and keeps the pass-1 "parallel" axis wide enough to give both
    # v7x TensorCores work.
    if C % _SUB != 0:
        return C
    for t in (64, 32, 16, 8):
        if C % t == 0 and C // t >= 2:
            return t
    return _SUB   # C == 8: a single channel tile is unavoidable


def _pick_spatial_tiles(N, HW, c_tile, itemsize, block_budget):
    """Pick (n_blk, c_tile, hw_tile) so the x block fits `block_budget` bytes
    and the last dim is lane-dense (multiple of 128) whenever HW allows it."""
    if HW % _LANE == 0:
        max_lanes = max(_LANE, block_budget // (itemsize * c_tile))
        hw_tile = _LANE
        t = _LANE
        while t <= HW:
            if HW % t == 0 and t <= max_lanes:
                hw_tile = t
            t += _LANE
        nb_limit = N
    else:
        # Ragged spatial extent: take the full (lane-sparse) row per image and
        # shrink the channel tile if that alone would blow the VMEM budget.
        hw_tile = HW
        while (c_tile % _SUB == 0 and c_tile > _SUB
               and c_tile * hw_tile * itemsize > block_budget):
            c_tile //= 2
        nb_limit = 32     # bounds the static per-image unroll in pass 1

    n_blk = 1
    if hw_tile == HW:
        # Small / ragged feature maps: widen the batch dim of the block to
        # amortize the ~0.35us per-grid-step overhead.
        per_image = max(1, c_tile * hw_tile * itemsize)
        cap = min(nb_limit, max(1, block_budget // per_image))
        for nb in range(min(N, cap), 0, -1):
            if N % nb == 0:
                n_blk = nb
                break
    return n_blk, c_tile, hw_tile


# --------------------------------------------------------------- wrapper ---


def dial_forward(x_nchw, weight, bias, *, eps=1e-5):
    """DomainAdaptationLayer.forward for the active (source) BN branch."""
    N, C, H, W = x_nchw.shape
    HW = H * W
    M = N * HW
    itemsize = jnp.dtype(x_nchw.dtype).itemsize

    x3 = x_nchw.reshape(N, C, HW)          # free reshape, no data movement
    w2 = weight.reshape(C, 1).astype(jnp.float32)
    b2 = bias.reshape(C, 1).astype(jnp.float32)

    # Generation-aware VMEM budget: raise the scoped limit well above the
    # 16/32 MiB defaults (small tiles leave most of the HBM roofline unused)
    # while staying comfortably below v7x's 64 MiB physical VMEM.
    vmem_cap = _vmem_capacity_bytes()
    vmem_limit = int(min(vmem_cap * 2 // 3, 48 * 1024 * 1024))
    slack = 2 * 1024 * 1024                # scratch, (C,1) vectors, headroom

    c_tile = _pick_c_tile(C)
    min_block = c_tile * _LANE * itemsize

    # Per-pass block budgets: pass 1 only double-buffers the x input (its
    # outputs/scratch are tiny), so its per-block budget is ~2x pass 2's
    # (which double-buffers both the x input and the output).
    p1_budget = max(min_block, (vmem_limit - slack) // 2)
    p1_budget = min(p1_budget, c_tile * _LANE * itemsize * _MAX_CHUNKS)
    p2_budget = max(min_block, (vmem_limit - slack) // 4)
    p2_budget = min(p2_budget, 12 * 1024 * 1024)

    n1, c1, hw1 = _pick_spatial_tiles(N, HW, c_tile, itemsize, p1_budget)
    n2, c2, hw2 = _pick_spatial_tiles(N, HW, c_tile, itemsize, p2_budget)

    # ---- pass 1: per-channel folded scale / shift ---------------------------
    lane_chunks = hw1 // _LANE if hw1 % _LANE == 0 else 0
    acc_w = _LANE if lane_chunks else 1
    grid1 = (C // c1, N // n1, HW // hw1)
    x1_spec = pl.BlockSpec((n1, c1, hw1), lambda c, n, h: (n, c, h))
    cvec1 = pl.BlockSpec((c1, 1), lambda c, n, h: (c, 0))
    # NOTE: x1_spec could use pipeline_mode=pl.Buffered(3) if blocks stayed
    # tiny; with the budget-sized blocks above the default 2-deep pipeline
    # already hides the DMA.
    # TODO(synk): for very small C on v7x (only one channel tile) pass 1 runs
    # on a single TensorCore; a per-N partial-sum layout with an extra combine
    # step would recover megacore coverage there.

    scale, shift = pl.pallas_call(
        functools.partial(_stats_kernel, eps=float(eps), inv_m=1.0 / M,
                          n_blk=n1, lane_chunks=lane_chunks),
        out_shape=(jax.ShapeDtypeStruct((C, 1), jnp.float32),
                   jax.ShapeDtypeStruct((C, 1), jnp.float32)),
        grid=grid1,
        in_specs=[x1_spec, cvec1, cvec1],
        out_specs=(cvec1, cvec1),
        scratch_shapes=[pltpu.VMEM((c1, acc_w), jnp.float32),
                        pltpu.VMEM((c1, acc_w), jnp.float32)],
        compiler_params=pltpu.CompilerParams(
            dimension_semantics=("parallel", "arbitrary", "arbitrary"),
            vmem_limit_bytes=vmem_limit),
        cost_estimate=pl.CostEstimate(
            flops=3 * x3.size, transcendentals=C,
            bytes_accessed=x3.size * itemsize + 4 * C * 4),
    )(x3, w2, b2)

    # ---- pass 2: out = x * scale_c + shift_c --------------------------------
    grid2 = (C // c2, N // n2, HW // hw2)
    x2_spec = pl.BlockSpec((n2, c2, hw2), lambda c, n, h: (n, c, h))
    cvec2 = pl.BlockSpec((c2, 1), lambda c, n, h: (c, 0))

    out3 = pl.pallas_call(
        _apply_kernel,
        out_shape=jax.ShapeDtypeStruct((N, C, HW), x_nchw.dtype),
        grid=grid2,
        in_specs=[x2_spec, cvec2, cvec2],
        out_specs=x2_spec,
        compiler_params=pltpu.CompilerParams(
            dimension_semantics=("parallel", "parallel", "parallel"),
            vmem_limit_bytes=vmem_limit),
        cost_estimate=pl.CostEstimate(
            flops=2 * x3.size, transcendentals=0,
            bytes_accessed=2 * x3.size * itemsize + 2 * C * 4),
        # TODO(synk): if the caller can consume x destructively, add
        # input_output_aliases={0: 0} here to drop the extra HBM allocation.
    )(x3, scale, shift)

    return out3.reshape(N, C, H, W)


# -------------------------------------------------------------- reference ---


def _reference(x_nchw, weight, bias, eps=1e-5):
    # Pure-JAX reference: training-mode BatchNorm2d(affine=False) + affine.
    x = x_nchw.astype(jnp.float32)
    mean = jnp.mean(x, axis=(0, 2, 3), keepdims=True)
    var = jnp.mean((x - mean) ** 2, axis=(0, 2, 3), keepdims=True)
    out = (x - mean) * jax.lax.rsqrt(var + eps)
    return weight.reshape(1, -1, 1, 1) * out + bias.reshape(1, -1, 1, 1)


if __name__ == "__main__":
    # Small shapes consistent with the module: NCHW input, planes = C.
    N, C, H, W = 2, 4, 16, 16

    key = jax.random.PRNGKey(0)
    kx, kw, kb = jax.random.split(key, 3)
    x = jax.random.normal(kx, (N, C, H, W), dtype=jnp.float32)
    # nn.Parameter(torch.Tensor(planes)) is uninitialized in the module;
    # initialize deterministically here.
    weight = jax.random.normal(kw, (C,), dtype=jnp.float32)
    bias = jax.random.normal(kb, (C,), dtype=jnp.float32)

    out = jax.block_until_ready(dial_forward(x, weight, bias))
    ref = _reference(x, weight, bias)
    np.testing.assert_allclose(np.asarray(out), np.asarray(ref),
                               rtol=1e-4, atol=1e-4)

    # TODO(synk): target-domain BN branch (index=1) and running-stat updates
    # are host-side module state switching, not kernel compute; only the
    # active branch's batch-stat normalization + affine is implemented here.
    print("KERNEL_OK")
</pallas_src>

<mosaic_0001>
module attributes {stable_mosaic.version = 11 : i64} {
  func.func @_stats_kernel(%arg0: i32, %arg1: i32, %arg2: i32, %arg3: memref<2x4x256xf32, #tpu.memory_space<vmem>>, %arg4: memref<4x1xf32, #tpu.memory_space<vmem>>, %arg5: memref<4x1xf32, #tpu.memory_space<vmem>>, %arg6: memref<4x1xf32, #tpu.memory_space<vmem>>, %arg7: memref<4x1xf32, #tpu.memory_space<vmem>>, %arg8: memref<4x128xf32, #tpu.memory_space<vmem>>, %arg9: memref<4x128xf32, #tpu.memory_space<vmem>>) attributes {dimension_semantics = [#tpu.dimension_semantics<parallel>, #tpu.dimension_semantics<arbitrary>, #tpu.dimension_semantics<arbitrary>], iteration_bounds = array<i64: 1, 1, 1>, scalar_prefetch = 0 : i64, scratch_operands = 2 : i64, tpu.core_type = #tpu.core_type<tc>, window_params = [{transform_indices = @transform_0, window_bounds = array<i64: 2, 4, 256>}, {transform_indices = @transform_1, window_bounds = array<i64: 4, 1>}, {transform_indices = @transform_2, window_bounds = array<i64: 4, 1>}, {transform_indices = @transform_3, window_bounds = array<i64: 4, 1>}, {transform_indices = @transform_4, window_bounds = array<i64: 4, 1>}]} {
    %c0_i32 = arith.constant 0 : i32
    %0 = arith.cmpi eq, %arg1, %c0_i32 : i32
    %c0_i32_0 = arith.constant 0 : i32
    %1 = arith.cmpi eq, %arg2, %c0_i32_0 : i32
    %2 = arith.andi %0, %1 : i1
    %3 = arith.extui %2 : i1 to i32
    %c0_i32_1 = arith.constant 0 : i32
    %4 = arith.cmpi ne, %3, %c0_i32_1 : i32
    scf.if %4 {
      %cst = arith.constant 0.000000e+00 : f32
      %46 = vector.broadcast %cst : f32 to vector<4x128xf32>
      %c0_46 = arith.constant 0 : index
      %c0_47 = arith.constant 0 : index
      %47 = vector.load %arg8[%c0_46, %c0_47] : memref<4x128xf32, #tpu.memory_space<vmem>>, vector<4x128xf32>
      tpu.vector_store %arg8[%c0_46, %c0_47], %46 {strides = array<i32>} : memref<4x128xf32, #tpu.memory_space<vmem>>, vector<4x128xf32>,
      %cst_48 = arith.constant 0.000000e+00 : f32
      %48 = vector.broadcast %cst_48 : f32 to vector<4x128xf32>
      %c0_49 = arith.constant 0 : index
      %c0_50 = arith.constant 0 : index
      %49 = vector.load %arg9[%c0_49, %c0_50] : memref<4x128xf32, #tpu.memory_space<vmem>>, vector<4x128xf32>
      tpu.vector_store %arg9[%c0_49, %c0_50], %48 {strides = array<i32>} : memref<4x128xf32, #tpu.memory_space<vmem>>, vector<4x128xf32>,
    } else {
    }
    %c0 = arith.constant 0 : index
    %c0_2 = arith.constant 0 : index
    %c0_3 = arith.constant 0 : index
    %5 = vector.load %arg3[%c0, %c0_2, %c0_3] : memref<2x4x256xf32, #tpu.memory_space<vmem>>, vector<1x4x128xf32>
    %6 = vector.shape_cast %5 : vector<1x4x128xf32> to vector<4x128xf32>
    %c0_4 = arith.constant 0 : index
    %c0_5 = arith.constant 0 : index
    %7 = vector.load %arg8[%c0_4, %c0_5] : memref<4x128xf32, #tpu.memory_space<vmem>>, vector<4x128xf32>
    %8 = arith.addf %7, %6 : vector<4x128xf32>
    %c0_6 = arith.constant 0 : index
    %c0_7 = arith.constant 0 : index
    %9 = vector.load %arg8[%c0_6, %c0_7] : memref<4x128xf32, #tpu.memory_space<vmem>>, vector<4x128xf32>
    tpu.vector_store %arg8[%c0_6, %c0_7], %8 {strides = array<i32>} : memref<4x128xf32, #tpu.memory_space<vmem>>, vector<4x128xf32>,
    %c0_8 = arith.constant 0 : index
    %c0_9 = arith.constant 0 : index
    %10 = vector.load %arg9[%c0_8, %c0_9] : memref<4x128xf32, #tpu.memory_space<vmem>>, vector<4x128xf32>
    %11 = arith.mulf %6, %6 : vector<4x128xf32>
    %12 = arith.addf %10, %11 : vector<4x128xf32>
    %c0_10 = arith.constant 0 : index
    %c0_11 = arith.constant 0 : index
    %13 = vector.load %arg9[%c0_10, %c0_11] : memref<4x128xf32, #tpu.memory_space<vmem>>, vector<4x128xf32>
    tpu.vector_store %arg9[%c0_10, %c0_11], %12 {strides = array<i32>} : memref<4x128xf32, #tpu.memory_space<vmem>>, vector<4x128xf32>,
    %c0_12 = arith.constant 0 : index
    %c0_13 = arith.constant 0 : index
    %c128 = arith.constant 128 : index
    %14 = vector.load %arg3[%c0_12, %c0_13, %c128] : memref<2x4x256xf32, #tpu.memory_space<vmem>>, vector<1x4x128xf32>
    %15 = vector.shape_cast %14 : vector<1x4x128xf32> to vector<4x128xf32>
    %c0_14 = arith.constant 0 : index
    %c0_15 = arith.constant 0 : index
    %16 = vector.load %arg8[%c0_14, %c0_15] : memref<4x128xf32, #tpu.memory_space<vmem>>, vector<4x128xf32>
    %17 = arith.addf %16, %15 : vector<4x128xf32>
    %c0_16 = arith.constant 0 : index
    %c0_17 = arith.constant 0 : index
    %18 = vector.load %arg8[%c0_16, %c0_17] : memref<4x128xf32, #tpu.memory_space<vmem>>, vector<4x128xf32>
    tpu.vector_store %arg8[%c0_16, %c0_17], %17 {strides = array<i32>} : memref<4x128xf32, #tpu.memory_space<vmem>>, vector<4x128xf32>,
    %c0_18 = arith.constant 0 : index
    %c0_19 = arith.constant 0 : index
    %19 = vector.load %arg9[%c0_18, %c0_19] : memref<4x128xf32, #tpu.memory_space<vmem>>, vector<4x128xf32>
    %20 = arith.mulf %15, %15 : vector<4x128xf32>
    %21 = arith.addf %19, %20 : vector<4x128xf32>
    %c0_20 = arith.constant 0 : index
    %c0_21 = arith.constant 0 : index
    %22 = vector.load %arg9[%c0_20, %c0_21] : memref<4x128xf32, #tpu.memory_space<vmem>>, vector<4x128xf32>
    tpu.vector_store %arg9[%c0_20, %c0_21], %21 {strides = array<i32>} : memref<4x128xf32, #tpu.memory_space<vmem>>, vector<4x128xf32>,
    %c1 = arith.constant 1 : index
    %c0_22 = arith.constant 0 : index
    %c0_23 = arith.constant 0 : index
    %23 = vector.load %arg3[%c1, %c0_22, %c0_23] : memref<2x4x256xf32, #tpu.memory_space<vmem>>, vector<1x4x128xf32>
    %24 = vector.shape_cast %23 : vector<1x4x128xf32> to vector<4x128xf32>
    %c0_24 = arith.constant 0 : index
    %c0_25 = arith.constant 0 : index
    %25 = vector.load %arg8[%c0_24, %c0_25] : memref<4x128xf32, #tpu.memory_space<vmem>>, vector<4x128xf32>
    %26 = arith.addf %25, %24 : vector<4x128xf32>
    %c0_26 = arith.constant 0 : index
    %c0_27 = arith.constant 0 : index
    %27 = vector.load %arg8[%c0_26, %c0_27] : memref<4x128xf32, #tpu.memory_space<vmem>>, vector<4x128xf32>
    tpu.vector_store %arg8[%c0_26, %c0_27], %26 {strides = array<i32>} : memref<4x128xf32, #tpu.memory_space<vmem>>, vector<4x128xf32>,
    %c0_28 = arith.constant 0 : index
    %c0_29 = arith.constant 0 : index
    %28 = vector.load %arg9[%c0_28, %c0_29] : memref<4x128xf32, #tpu.memory_space<vmem>>, vector<4x128xf32>
    %29 = arith.mulf %24, %24 : vector<4x128xf32>
    %30 = arith.addf %28, %29 : vector<4x128xf32>
    %c0_30 = arith.constant 0 : index
    %c0_31 = arith.constant 0 : index
    %31 = vector.load %arg9[%c0_30, %c0_31] : memref<4x128xf32, #tpu.memory_space<vmem>>, vector<4x128xf32>
    tpu.vector_store %arg9[%c0_30, %c0_31], %30 {strides = array<i32>} : memref<4x128xf32, #tpu.memory_space<vmem>>, vector<4x128xf32>,
    %c1_32 = arith.constant 1 : index
    %c0_33 = arith.constant 0 : index
    %c128_34 = arith.constant 128 : index
    %32 = vector.load %arg3[%c1_32, %c0_33, %c128_34] : memref<2x4x256xf32, #tpu.memory_space<vmem>>, vector<1x4x128xf32>
    %33 = vector.shape_cast %32 : vector<1x4x128xf32> to vector<4x128xf32>
    %c0_35 = arith.constant 0 : index
    %c0_36 = arith.constant 0 : index
    %34 = vector.load %arg8[%c0_35, %c0_36] : memref<4x128xf32, #tpu.memory_space<vmem>>, vector<4x128xf32>
    %35 = arith.addf %34, %33 : vector<4x128xf32>
    %c0_37 = arith.constant 0 : index
    %c0_38 = arith.constant 0 : index
    %36 = vector.load %arg8[%c0_37, %c0_38] : memref<4x128xf32, #tpu.memory_space<vmem>>, vector<4x128xf32>
    tpu.vector_store %arg8[%c0_37, %c0_38], %35 {strides = array<i32>} : memref<4x128xf32, #tpu.memory_space<vmem>>, vector<4x128xf32>,
    %c0_39 = arith.constant 0 : index
    %c0_40 = arith.constant 0 : index
    %37 = vector.load %arg9[%c0_39, %c0_40] : memref<4x128xf32, #tpu.memory_space<vmem>>, vector<4x128xf32>
    %38 = arith.mulf %33, %33 : vector<4x128xf32>
    %39 = arith.addf %37, %38 : vector<4x128xf32>
    %c0_41 = arith.constant 0 : index
    %c0_42 = arith.constant 0 : index
    %40 = vector.load %arg9[%c0_41, %c0_42] : memref<4x128xf32, #tpu.memory_space<vmem>>, vector<4x128xf32>
    tpu.vector_store %arg9[%c0_41, %c0_42], %39 {strides = array<i32>} : memref<4x128xf32, #tpu.memory_space<vmem>>, vector<4x128xf32>,
    %c0_i32_43 = arith.constant 0 : i32
    %41 = arith.cmpi eq, %arg1, %c0_i32_43 : i32
    %c0_i32_44 = arith.constant 0 : i32
    %42 = arith.cmpi eq, %arg2, %c0_i32_44 : i32
    %43 = arith.andi %41, %42 : i1
    %44 = arith.extui %43 : i1 to i32
    %c0_i32_45 = arith.constant 0 : i32
    %45 = arith.cmpi ne, %44, %c0_i32_45 : i32
    scf.if %45 {
      %c0_46 = arith.constant 0 : index
      %c0_47 = arith.constant 0 : index
      %46 = vector.load %arg8[%c0_46, %c0_47] : memref<4x128xf32, #tpu.memory_space<vmem>>, vector<4x128xf32>
      %cst = arith.constant dense<0.000000e+00> : vector<4xf32>
      %47 = vector.multi_reduction <add>, %46, %cst [1] : vector<4x128xf32> to vector<4xf32>
      %48 = vector.shape_cast %47 : vector<4xf32> to vector<4x1xf32>
      %c0_48 = arith.constant 0 : index
      %c0_49 = arith.constant 0 : index
      %49 = vector.load %arg9[%c0_48, %c0_49] : memref<4x128xf32, #tpu.memory_space<vmem>>, vector<4x128xf32>
      %cst_50 = arith.constant dense<0.000000e+00> : vector<4xf32>
      %50 = vector.multi_reduction <add>, %49, %cst_50 [1] : vector<4x128xf32> to vector<4xf32>
      %51 = vector.shape_cast %50 : vector<4xf32> to vector<4x1xf32>
      %cst_51 = arith.constant 0.001953125 : f32
      %52 = vector.broadcast %cst_51 : f32 to vector<4x1xf32>
      %53 = arith.mulf %48, %52 : vector<4x1xf32>
      %cst_52 = arith.constant 0.001953125 : f32
      %54 = vector.broadcast %cst_52 : f32 to vector<4x1xf32>
      %55 = arith.mulf %51, %54 : vector<4x1xf32>
      %56 = arith.mulf %53, %53 : vector<4x1xf32>
      %57 = arith.subf %55, %56 : vector<4x1xf32>
      %cst_53 = arith.constant 0.000000e+00 : f32
      %58 = vector.broadcast %cst_53 : f32 to vector<4x1xf32>
      %59 = arith.maximumf %57, %58 : vector<4x1xf32>
      %cst_54 = arith.constant 9.99999974E-6 : f32
      %60 = vector.broadcast %cst_54 : f32 to vector<4x1xf32>
      %61 = arith.addf %59, %60 : vector<4x1xf32>
      %62 = math.rsqrt %61 : vector<4x1xf32>
      %c0_55 = arith.constant 0 : index
      %c0_56 = arith.constant 0 : index
      %63 = vector.load %arg4[%c0_55, %c0_56] : memref<4x1xf32, #tpu.memory_space<vmem>>, vector<4x1xf32>
      %64 = arith.mulf %63, %62 : vector<4x1xf32>
      %c0_57 = arith.constant 0 : index
      %c0_58 = arith.constant 0 : index
      %65 = vector.load %arg6[%c0_57, %c0_58] : memref<4x1xf32, #tpu.memory_space<vmem>>, vector<4x1xf32>
      tpu.vector_store %arg6[%c0_57, %c0_58], %64 {strides = array<i32>} : memref<4x1xf32, #tpu.memory_space<vmem>>, vector<4x1xf32>,
      %c0_59 = arith.constant 0 : index
      %c0_60 = arith.constant 0 : index
      %66 = vector.load %arg5[%c0_59, %c0_60] : memref<4x1xf32, #tpu.memory_space<vmem>>, vector<4x1xf32>
      %67 = arith.mulf %53, %64 : vector<4x1xf32>
      %68 = arith.subf %66, %67 : vector<4x1xf32>
      %c0_61 = arith.constant 0 : index
      %c0_62 = arith.constant 0 : index
      %69 = vector.load %arg7[%c0_61, %c0_62] : memref<4x1xf32, #tpu.memory_space<vmem>>, vector<4x1xf32>
      tpu.vector_store %arg7[%c0_61, %c0_62], %68 {strides = array<i32>} : memref<4x1xf32, #tpu.memory_space<vmem>>, vector<4x1xf32>,
    } else {
    }
    return
  }
  func.func @transform_0(%arg0: i32, %arg1: i32, %arg2: i32) -> (i32, i32, i32) {
    %c0_i32 = arith.constant 0 : i32
    return %arg1, %arg0, %arg2 : i32, i32, i32
  }
  func.func @transform_1(%arg0: i32, %arg1: i32, %arg2: i32) -> (i32, i32) {
    %c0_i32 = arith.constant 0 : i32
    %c0_i32_0 = arith.constant 0 : i32
    return %arg0, %c0_i32 : i32, i32
  }
  func.func @transform_2(%arg0: i32, %arg1: i32, %arg2: i32) -> (i32, i32) {
    %c0_i32 = arith.constant 0 : i32
    %c0_i32_0 = arith.constant 0 : i32
    return %arg0, %c0_i32 : i32, i32
  }
  func.func @transform_3(%arg0: i32, %arg1: i32, %arg2: i32) -> (i32, i32) {
    %c0_i32 = arith.constant 0 : i32
    %c0_i32_0 = arith.constant 0 : i32
    return %arg0, %c0_i32 : i32, i32
  }
  func.func @transform_4(%arg0: i32, %arg1: i32, %arg2: i32) -> (i32, i32) {
    %c0_i32 = arith.constant 0 : i32
    %c0_i32_0 = arith.constant 0 : i32
    return %arg0, %c0_i32 : i32, i32
  }
}

</mosaic_0001>

<llo_original>
// kernel: tpu_custom_call.1
$region0: #{tpu_custom_call.1}
  #allocation0 [shape = 'u32[]', space=smem, size = 0x4, offset = 0x4, fixed_abs, tag = 'smem constant byte address 0x4 - core index']
  #allocation1 [shape = 'u32[144,128]{1,0:T(1,128)}', space=vmem, size = 0x12000, scoped, tag = 'internal scratch']
  #allocation2 [shape = 'f32[4,128]{1,0:T(4,128)}', space=vmem, size = 0x800, scoped, tag = 'scratch operand']
  #allocation3 [shape = 'f32[4,128]{1,0:T(4,128)}', space=vmem, size = 0x800, scoped, tag = 'scratch operand']
  %s0 = inlined_call_operand.hbm [shape: f32[2,4,256], index: 0, kind: input, shape index: {}]
  %s1 = inlined_call_operand.vmem [shape: f32[4,1], index: 1, kind: input, shape index: {}]
  %s2 = inlined_call_operand.vmem [shape: f32[4,1], index: 2, kind: input, shape index: {}]
  %s3 = inlined_call_operand.vmem [shape: f32[4,1], index: 3, kind: output, shape index: {0}]
  %s4 = inlined_call_operand.vmem [shape: f32[4,1], index: 4, kind: output, shape index: {1}]
  %5 = xla_tuple %s3, %s4
  %s6 = sld [smem:[#allocation0]]
  $region42: #{tpu_custom_call.1} parent=0
    _
  %s8 = ssub.s32 1, %s6
  %s9 = scalar_select 0, %s8, %s6
  $region1: #{tpu_custom_call.1} parent=0
    #allocation4 [shape = 'u8[8192]{0}', space=vmem, size = 0x2000, scoped, tag = 'input window, operand 0, single buffered']
    #allocation5 [shape = 's32[1]{0}', space=sflag, size = 0x4, scoped, tag = 'scoped memory for tpu_custom_call.1']
    %10 = vsyncpa [#allocation5], 0
    // Predicated region
    $region2: #{tpu_custom_call.1} parent=1 // pred_check
      _
    $region3: #{tpu_custom_call.1} parent=1 // pred_check_branch
      %12 = sbr.rel (0) target = $region5
    $region4: #{tpu_custom_call.1} parent=1 // pred_region
      %s14 = ssub.s32 256, 256
      %15 = vsyncadd [#allocation5], %s14
      %s16 = sshll.u32 [#allocation4], 4
      %s17 = int_to_ptr.vmem [resolvable:$true] %s16
      %22 = dma.hbm_to_vmem [thread:$0]  %s0, 256, %s17, [#allocation5], 128, 128, 8
    $region5: #{tpu_custom_call.1} parent=1 // pred_fallthru
      _
    // Predicated region
    $region6: #{tpu_custom_call.1} parent=1 // pred_check
      _
    $region7: #{tpu_custom_call.1} parent=1 // pred_check_branch
      %24 = sbr.rel (0) target = $region9
    $region8: #{tpu_custom_call.1} parent=1 // pred_region
      _
    $region9: #{tpu_custom_call.1} parent=1 // pred_fallthru
      _
    // Predicated region
    $region10: #{tpu_custom_call.1} parent=1 // pred_check
      _
    $region11: #{tpu_custom_call.1} parent=1 // pred_check_branch
      %26 = sbr.rel (0) target = $region13
    $region12: #{tpu_custom_call.1} parent=1 // pred_region
      _
    $region13: #{tpu_custom_call.1} parent=1 // pred_fallthru
      _
    // Predicated region
    $region14: #{tpu_custom_call.1} parent=1 // pred_check
      _
    $region15: #{tpu_custom_call.1} parent=1 // pred_check_branch
      %28 = sbr.rel (0) target = $region17
    $region16: #{tpu_custom_call.1} parent=1 // pred_region
      %29 = dma.done [#allocation5], 256
    $region17: #{tpu_custom_call.1} parent=1 // pred_fallthru
      _
    %p30 = scmp.eq.s32.totalorder 0, 0
    %p31 = scmp.eq.s32.totalorder 0, 0
    %p32 = pnand %p30, %p31
    %p33 = pneg %p32
    // Predicated region
    $region18: #{tpu_custom_call.1} parent=1 // pred_check
      _
    $region19: #{tpu_custom_call.1} parent=1 // pred_check_branch
      %35 = sbr.rel (%p32) target = $region21
    $region20: #{tpu_custom_call.1} parent=1 // pred_region
      %36 = vst [vmem:[#allocation2] sm:$0xf] 0.0
      %37 = vst [vmem:[#allocation3] sm:$0xf] 0.0
    $region21: #{tpu_custom_call.1} parent=1 // pred_fallthru
      _
    %v38 = vld [vmem:[#allocation4] sm:$0xf]
    %v39 = vld [vmem:[#allocation2] sm:$0xf]
    %v40 = vadd.f32 %v39, %v38
    %41 = vst [vmem:[#allocation2] sm:$0xf] %v40
    %v42 = vld [vmem:[#allocation3] sm:$0xf]
    %v43 = vmul.f32 %v38, %v38
    %v44 = vadd.f32 %v42, %v43
    %45 = vst [vmem:[#allocation3] sm:$0xf] %v44
    %v46 = vld [vmem:[#allocation4 + $0x4] sm:$0xf]
    %v47 = vld [vmem:[#allocation2] sm:$0xf]
    %v48 = vadd.f32 %v47, %v46
    %49 = vst [vmem:[#allocation2] sm:$0xf] %v48
    %v50 = vld [vmem:[#allocation3] sm:$0xf]
    %v51 = vmul.f32 %v46, %v46
    %v52 = vadd.f32 %v50, %v51
    %53 = vst [vmem:[#allocation3] sm:$0xf] %v52
    %s54 = scalar_lea.vmem [#allocation4], 8
    %v55 = vld [vmem:[%s54] sm:$0xf]
    %v56 = vld [vmem:[#allocation2] sm:$0xf]
    %v57 = vadd.f32 %v56, %v55
    %58 = vst [vmem:[#allocation2] sm:$0xf] %v57
    %v59 = vld [vmem:[#allocation3] sm:$0xf]
    %v60 = vmul.f32 %v55, %v55
    %v61 = vadd.f32 %v59, %v60
    %62 = vst [vmem:[#allocation3] sm:$0xf] %v61
    %v63 = vld [vmem:[%s54 + $0x4] sm:$0xf]
    %v64 = vld [vmem:[#allocation2] sm:$0xf]
    %v65 = vadd.f32 %v64, %v63
    %66 = vst [vmem:[#allocation2] sm:$0xf] %v65
    %v67 = vld [vmem:[#allocation3] sm:$0xf]
    %v68 = vmul.f32 %v63, %v63
    %v69 = vadd.f32 %v67, %v68
    %70 = vst [vmem:[#allocation3] sm:$0xf] %v69
    // Predicated region
    $region22: #{tpu_custom_call.1} parent=1 // pred_check
      _
    $region23: #{tpu_custom_call.1} parent=1 // pred_check_branch
      %72 = sbr.rel (%p32) target = $region25
    $region24: #{tpu_custom_call.1} parent=1 // pred_region
      %v73 = vld [vmem:[#allocation2] sm:$0xf]
      %vm74 = vcmask 1043456
      %v75 = vsel %vm74, %v73, 0.0
      %76 = vadd.xlane.f32.xlu0 %v75
      %v77 = vpop.xlane.xlu0 %76
      %v78 = vld [vmem:[#allocation3] sm:$0xf]
      %v79 = vsel %vm74, %v78, 0.0
      %80 = vadd.xlane.f32.xlu0 %v79
      %v81 = vpop.xlane.xlu0 %80
      %v82 = vmul.f32 %v77, 0.001953125
      %v83 = vmul.f32 %v81, 0.001953125
      %v84 = vmul.f32 %v82, %v82
      %v85 = vsub.f32 %v83, %v84
      %v86 = vmax.f32 %v85, 0.0
      %v87 = vadd.f32 %v86, 1e-05
      %v88 = vrsqrt.pop %v87
      %v89 = vld [vmem:[%s1] sm:$0xf]
      %v90 = vmul.f32 %v89, %v88
      %vm91 = vcmask 3072
      %92 = vst.msk [vmem:[%s3] sm:$0xf] %vm91, %v90
      %v93 = vld [vmem:[%s2] sm:$0xf]
      %v94 = vmul.f32 %v82, %v90
      %v95 = vsub.f32 %v93, %v94
      %96 = vst.msk [vmem:[%s4] sm:$0xf] %vm91, %v95
    $region25: #{tpu_custom_call.1} parent=1 // pred_fallthru
      _
    // Predicated region
    $region26: #{tpu_custom_call.1} parent=1 // pred_check
      _
    $region27: #{tpu_custom_call.1} parent=1 // pred_check_branch
      %98 = sbr.rel (0) target = $region29
    $region28: #{tpu_custom_call.1} parent=1 // pred_region
      _
    $region29: #{tpu_custom_call.1} parent=1 // pred_fallthru
      _
    // Predicated region
    $region30: #{tpu_custom_call.1} parent=1 // pred_check
      _
    $region31: #{tpu_custom_call.1} parent=1 // pred_check_branch
      %100 = sbr.rel (0) target = $region33
    $region32: #{tpu_custom_call.1} parent=1 // pred_region
      _
    $region33: #{tpu_custom_call.1} parent=1 // pred_fallthru
      _
    // Predicated region
    $region34: #{tpu_custom_call.1} parent=1 // pred_check
      _
    $region35: #{tpu_custom_call.1} parent=1 // pred_check_branch
      %102 = sbr.rel (0) target = $region37
    $region36: #{tpu_custom_call.1} parent=1 // pred_region
      _
    $region37: #{tpu_custom_call.1} parent=1 // pred_fallthru
      _
    // Predicated region
    $region38: #{tpu_custom_call.1} parent=1 // pred_check
      _
    $region39: #{tpu_custom_call.1} parent=1 // pred_check_branch
      %104 = sbr.rel (0) target = $region41
    $region40: #{tpu_custom_call.1} parent=1 // pred_region
      _
    $region41: #{tpu_custom_call.1} parent=1 // pred_fallthru
      _
    %105 = vsyncpa [#allocation5], 1

</llo_original>
